<compile_context>
chip_gen: v5e
topology: v5e:2x2
jax: 0.10.0
libtpu: 0.0.40
codegen_flags: <defaults>
</compile_context>

<pallas_src>
import functools

import numpy as np
import jax
import jax.numpy as jnp
from jax.experimental import pallas as pl
from jax.experimental.pallas import tpu as pltpu


def _round_up(x: int, m: int) -> int:
    return ((x + m - 1) // m) * m


def _dist2_kernel(wp_ref, pp_ref, d2_ref):
    # wp_ref: (3, tn, 1)  wrapped-atom coords, atoms on sublanes
    # pp_ref: (3, 1, tm)  padded-image coords, images on lanes
    # d2_ref: (tn, tm)    squared distance output (single store per element)
    d0 = pp_ref[0] - wp_ref[0]          # (1, tm) - (tn, 1) -> (tn, tm)
    d1 = pp_ref[1] - wp_ref[1]
    d2 = pp_ref[2] - wp_ref[2]
    d2_ref[...] = d0 * d0 + d1 * d1 + d2 * d2


@functools.partial(jax.jit, static_argnums=(2, 3))
def _dist2_call(wp, pp, tn, tm):
    _, n_pad, _ = wp.shape
    _, _, m_pad = pp.shape
    grid = (n_pad // tn, m_pad // tm)
    return pl.pallas_call(
        _dist2_kernel,
        out_shape=jax.ShapeDtypeStruct((n_pad, m_pad), jnp.float32),
        grid_spec=pltpu.PrefetchScalarGridSpec(
            num_scalar_prefetch=0,
            grid=grid,
            in_specs=[
                pl.BlockSpec((3, tn, 1), lambda i, j: (0, i, 0)),
                pl.BlockSpec((3, 1, tm), lambda i, j: (0, 0, j)),
            ],
            out_specs=pl.BlockSpec((tn, tm), lambda i, j: (i, j)),
        ),
        compiler_params=pltpu.CompilerParams(
            dimension_semantics=("parallel", "parallel"),
            vmem_limit_bytes=32 * 1024 * 1024,
        ),
    )(wp, pp)


def _wrap_and_pad(positions, cell, cutoff, wrap_atoms):
    """Host glue identical to the torch module: wrap into cell + periodic padding."""
    positions = np.asarray(positions, dtype=np.float64)
    cell = np.asarray(cell, dtype=np.float64)
    if wrap_atoms:
        eps = 1e-7
        scaled = positions @ np.linalg.inv(cell) + eps
        scaled %= 1.0
        scaled -= eps
        wrapped = scaled @ cell
    else:
        wrapped = positions
    norm_a = np.linalg.norm(np.cross(cell[1], cell[2]))
    norm_b = np.linalg.norm(np.cross(cell[2], cell[0]))
    norm_c = np.linalg.norm(np.cross(cell[0], cell[1]))
    volume = float(np.sum(cell[0] * np.cross(cell[1], cell[2])))
    pa = int(np.ceil(cutoff * norm_a / volume))
    pb = int(np.ceil(cutoff * norm_b / volume))
    pc = int(np.ceil(cutoff * norm_c / volume))
    ranges = [np.arange(-p, p + 1) for p in (pa, pb, pc)]
    padding_mat = (
        np.stack(np.meshgrid(*ranges, indexing="ij"), axis=-1)
        .reshape(-1, 3)
        .astype(np.float64)
    )
    p_size = padding_mat.shape[0]
    padded_pos = (wrapped[:, None, :] + padding_mat @ cell).reshape(-1, 3)
    return wrapped, padded_pos, p_size


def build_neighbor_list(positions, cell, cutoff=5.0, wrap_atoms=True):
    """Equivalent of TorchNeighborList._build_neighbor_list.

    Returns (pairs int64 (K,2), pair_diff float64 (K,3), pair_dist float64 (K,)).
    """
    positions = np.asarray(positions, dtype=np.float64)
    cell = np.asarray(cell, dtype=np.float64)
    n = positions.shape[0]

    wrapped, padded_pos, p_size = _wrap_and_pad(positions, cell, cutoff, wrap_atoms)
    m = padded_pos.shape[0]

    # --- TPU-friendly padding & tiling (zeros in the pad region; sliced off host-side) ---
    tn, tm = 512, 1024
    n_pad = max(8, _round_up(n, 8))
    if n_pad < tn:
        tn = n_pad
    n_pad = _round_up(n_pad, tn)
    m_pad = max(128, _round_up(m, 128))
    if m_pad < tm:
        tm = m_pad
    m_pad = _round_up(m_pad, tm)

    wp_dev = np.zeros((3, n_pad, 1), dtype=np.float32)
    wp_dev[:, :n, 0] = wrapped.T
    pp_dev = np.zeros((3, 1, m_pad), dtype=np.float32)
    pp_dev[:, 0, :m] = padded_pos.T

    d2 = jax.block_until_ready(_dist2_call(jnp.asarray(wp_dev), jnp.asarray(pp_dev), tn, tm))
    d2 = np.asarray(d2)[:n, :m]

    # --- host glue: f32 prefilter (with slack covering f32 rounding), exact f64 refine ---
    # TODO(synk): Pallas TPU has no float64, so the dense predicate is evaluated in f32
    # on-device; the returned geometry / final mask are recomputed in float64 here.
    coord_scale = float(max(np.max(np.abs(padded_pos)) if m else 1.0, 1.0))
    slack = 32.0 * np.finfo(np.float32).eps * 3.0 * coord_scale * coord_scale
    cand_i, cand_m = np.nonzero((d2 < cutoff * cutoff + slack) & (d2 > 1e-4 - slack))
    diff64 = padded_pos[cand_m] - wrapped[cand_i]
    dist64 = np.linalg.norm(diff64, axis=1)
    keep = (dist64 < cutoff) & (dist64 > 0.01)
    pairs = np.stack([cand_i[keep], cand_m[keep] // p_size], axis=1).astype(np.int64)
    return pairs, diff64[keep], dist64[keep]


if __name__ == "__main__":
    key = jax.random.PRNGKey(0)
    # small system: 16 atoms in a 10 Angstrom cubic cell, cutoff 5.0 -> 27 images
    positions = np.asarray(
        jax.random.uniform(key, (16, 3), minval=0.0, maxval=10.0), dtype=np.float64
    )
    cell = np.eye(3, dtype=np.float64) * 10.0
    cutoff = 5.0

    pairs, pair_diff, pair_dist = build_neighbor_list(
        positions, cell, cutoff=cutoff, wrap_atoms=True
    )

    # float64 brute-force reference (dense, tiny system) to validate the pair set
    wrapped, padded_pos, p_size = _wrap_and_pad(positions, cell, cutoff, True)
    d_ref = np.linalg.norm(padded_pos[None, :, :] - wrapped[:, None, :], axis=-1)
    ri, rm = np.nonzero((d_ref > 0.01) & (d_ref < cutoff))
    ref_pairs = np.stack([ri, rm // p_size], axis=1).astype(np.int64)

    assert pairs.shape == ref_pairs.shape and np.array_equal(pairs, ref_pairs)
    assert np.allclose(pair_dist, d_ref[ri, rm], rtol=0.0, atol=1e-9)
    assert np.allclose(pair_diff, padded_pos[rm] - wrapped[ri], rtol=0.0, atol=1e-9)
    assert pairs.shape[0] == pair_diff.shape[0] == pair_dist.shape[0]
    print("KERNEL_OK")
</pallas_src>

<mosaic_0001>
module attributes {stable_mosaic.version = 11 : i64} {
  func.func @_dist2_kernel(%arg0: i32, %arg1: i32, %arg2: memref<3x16x1xf32, #tpu.memory_space<vmem>>, %arg3: memref<3x1x512xf32, #tpu.memory_space<vmem>>, %arg4: memref<16x512xf32, #tpu.memory_space<vmem>>) attributes {dimension_semantics = [#tpu.dimension_semantics<parallel>, #tpu.dimension_semantics<parallel>], iteration_bounds = array<i64: 1, 1>, scalar_prefetch = 0 : i64, scratch_operands = 0 : i64, tpu.core_type = #tpu.core_type<tc>, window_params = [{transform_indices = @transform_0, window_bounds = array<i64: 3, 16, 1>}, {transform_indices = @transform_1, window_bounds = array<i64: 3, 1, 512>}, {transform_indices = @transform_2, window_bounds = array<i64: 16, 512>}]} {
    %c0 = arith.constant 0 : index
    %c0_0 = arith.constant 0 : index
    %c0_1 = arith.constant 0 : index
    %0 = vector.load %arg3[%c0, %c0_0, %c0_1] : memref<3x1x512xf32, #tpu.memory_space<vmem>>, vector<1x1x512xf32>
    %1 = vector.shape_cast %0 : vector<1x1x512xf32> to vector<1x512xf32>
    %c0_2 = arith.constant 0 : index
    %c0_3 = arith.constant 0 : index
    %c0_4 = arith.constant 0 : index
    %2 = vector.load %arg2[%c0_2, %c0_3, %c0_4] : memref<3x16x1xf32, #tpu.memory_space<vmem>>, vector<1x16x1xf32>
    %3 = vector.shape_cast %2 : vector<1x16x1xf32> to vector<16x1xf32>
    %4 = vector.broadcast %1 : vector<1x512xf32> to vector<16x512xf32>
    %5 = vector.broadcast %3 : vector<16x1xf32> to vector<16x512xf32>
    %6 = arith.subf %4, %5 : vector<16x512xf32>
    %c1 = arith.constant 1 : index
    %c0_5 = arith.constant 0 : index
    %c0_6 = arith.constant 0 : index
    %7 = vector.load %arg3[%c1, %c0_5, %c0_6] : memref<3x1x512xf32, #tpu.memory_space<vmem>>, vector<1x1x512xf32>
    %8 = vector.shape_cast %7 : vector<1x1x512xf32> to vector<1x512xf32>
    %c1_7 = arith.constant 1 : index
    %c0_8 = arith.constant 0 : index
    %c0_9 = arith.constant 0 : index
    %9 = vector.load %arg2[%c1_7, %c0_8, %c0_9] : memref<3x16x1xf32, #tpu.memory_space<vmem>>, vector<1x16x1xf32>
    %10 = vector.shape_cast %9 : vector<1x16x1xf32> to vector<16x1xf32>
    %11 = vector.broadcast %8 : vector<1x512xf32> to vector<16x512xf32>
    %12 = vector.broadcast %10 : vector<16x1xf32> to vector<16x512xf32>
    %13 = arith.subf %11, %12 : vector<16x512xf32>
    %c2 = arith.constant 2 : index
    %c0_10 = arith.constant 0 : index
    %c0_11 = arith.constant 0 : index
    %14 = vector.load %arg3[%c2, %c0_10, %c0_11] : memref<3x1x512xf32, #tpu.memory_space<vmem>>, vector<1x1x512xf32>
    %15 = vector.shape_cast %14 : vector<1x1x512xf32> to vector<1x512xf32>
    %c2_12 = arith.constant 2 : index
    %c0_13 = arith.constant 0 : index
    %c0_14 = arith.constant 0 : index
    %16 = vector.load %arg2[%c2_12, %c0_13, %c0_14] : memref<3x16x1xf32, #tpu.memory_space<vmem>>, vector<1x16x1xf32>
    %17 = vector.shape_cast %16 : vector<1x16x1xf32> to vector<16x1xf32>
    %18 = vector.broadcast %15 : vector<1x512xf32> to vector<16x512xf32>
    %19 = vector.broadcast %17 : vector<16x1xf32> to vector<16x512xf32>
    %20 = arith.subf %18, %19 : vector<16x512xf32>
    %21 = arith.mulf %6, %6 : vector<16x512xf32>
    %22 = arith.mulf %13, %13 : vector<16x512xf32>
    %23 = arith.addf %21, %22 : vector<16x512xf32>
    %24 = arith.mulf %20, %20 : vector<16x512xf32>
    %25 = arith.addf %23, %24 : vector<16x512xf32>
    %c0_15 = arith.constant 0 : index
    %c0_16 = arith.constant 0 : index
    %26 = vector.load %arg4[%c0_15, %c0_16] : memref<16x512xf32, #tpu.memory_space<vmem>>, vector<16x512xf32>
    tpu.vector_store %arg4[%c0_15, %c0_16], %25 {strides = array<i32>} : memref<16x512xf32, #tpu.memory_space<vmem>>, vector<16x512xf32>,
    return
  }
  func.func @transform_0(%arg0: i32, %arg1: i32) -> (i32, i32, i32) {
    %c0_i32 = arith.constant 0 : i32
    %c0_i32_0 = arith.constant 0 : i32
    %c0_i32_1 = arith.constant 0 : i32
    return %c0_i32, %arg0, %c0_i32_0 : i32, i32, i32
  }
  func.func @transform_1(%arg0: i32, %arg1: i32) -> (i32, i32, i32) {
    %c0_i32 = arith.constant 0 : i32
    %c0_i32_0 = arith.constant 0 : i32
    %c0_i32_1 = arith.constant 0 : i32
    return %c0_i32, %c0_i32_0, %arg1 : i32, i32, i32
  }
  func.func @transform_2(%arg0: i32, %arg1: i32) -> (i32, i32) {
    %c0_i32 = arith.constant 0 : i32
    return %arg0, %arg1 : i32, i32
  }
}

</mosaic_0001>

<llo_original>
// kernel: _dist2_call.1
$region0: #{_dist2_call.1}
  #allocation0 [shape = 'u32[]', space=smem, size = 0x4, offset = 0x4, fixed_abs, tag = 'smem constant byte address 0x4 - core index']
  #allocation1 [shape = 'u32[72,128]{1,0:T(1,128)}', space=vmem, size = 0x9000, scoped, tag = 'internal scratch']
  %s0 = inlined_call_operand.vmem [shape: f32[3,16,1], index: 0, kind: input, shape index: {}]
  %s1 = inlined_call_operand.vmem [shape: f32[3,1,512], index: 1, kind: input, shape index: {}]
  %s2 = inlined_call_operand.hbm [shape: f32[16,512], index: 2, kind: output, shape index: {}]
  %s3 = sld [smem:[#allocation0]]
  $region18: #{_dist2_call.1} parent=0
    _
  %s5 = ssub.s32 1, %s3
  %s6 = scalar_select 0, %s5, %s3
  $region1: #{_dist2_call.1} parent=0
    #allocation2 [shape = 'u8[32768]{0}', space=vmem, size = 0x8000, scoped, tag = 'output window, operand 0, single buffered']
    #allocation3 [shape = 's32[1]{0}', space=sflag, size = 0x4, scoped, tag = 'scoped memory for _dist2_call.1']
    %7 = vsyncpa [#allocation3], 0
    // Predicated region
    $region2: #{_dist2_call.1} parent=1 // pred_check
      _
    $region3: #{_dist2_call.1} parent=1 // pred_check_branch
      %9 = sbr.rel (0) target = $region5
    $region4: #{_dist2_call.1} parent=1 // pred_region
      _
    $region5: #{_dist2_call.1} parent=1 // pred_fallthru
      _
    // Predicated region
    $region6: #{_dist2_call.1} parent=1 // pred_check
      _
    $region7: #{_dist2_call.1} parent=1 // pred_check_branch
      %11 = sbr.rel (0) target = $region9
    $region8: #{_dist2_call.1} parent=1 // pred_region
      _
    $region9: #{_dist2_call.1} parent=1 // pred_fallthru
      _
    %v12 = vld [vmem:[%s1] sm:$0xf]
    %v13 = vld [vmem:[%s0] sm:$0xff]
    %v14 = vld [vmem:[%s0 + $0x8] sm:$0xff]
    %v16 = vperm.slane %v12, 0
    %v17 = vperm.slane %v12, 1
    %v18 = vperm.slane %v12, 2
    %v19 = vperm.slane %v12, 3
    %25 = vset.pattern.permute.xlu0 0
    %26 = vperm.xlu0 %25, %v13
    %v27 = vpop.permute.xlu0 %26
    %30 = vset.pattern.permute.xlu0 0
    %31 = vperm.xlu0 %30, %v14
    %v32 = vpop.permute.xlu0 %31
    %v34 = vsub.f32 %v16, %v27
    %v35 = vsub.f32 %v17, %v27
    %v36 = vsub.f32 %v18, %v27
    %v37 = vsub.f32 %v19, %v27
    %v38 = vsub.f32 %v16, %v32
    %v39 = vsub.f32 %v17, %v32
    %v40 = vsub.f32 %v18, %v32
    %v41 = vsub.f32 %v19, %v32
    %s42 = scalar_lea.vmem %s1, 4
    %v43 = vld [vmem:[%s42] sm:$0xf]
    %s44 = scalar_lea.vmem %s0, 16
    %v45 = vld [vmem:[%s44] sm:$0xff]
    %v46 = vld [vmem:[%s44 + $0x8] sm:$0xff]
    %v48 = vperm.slane %v43, 0
    %v49 = vperm.slane %v43, 1
    %v50 = vperm.slane %v43, 2
    %v51 = vperm.slane %v43, 3
    %57 = vset.pattern.permute.xlu0 0
    %58 = vperm.xlu0 %57, %v45
    %v59 = vpop.permute.xlu0 %58
    %62 = vset.pattern.permute.xlu0 0
    %63 = vperm.xlu0 %62, %v46
    %v64 = vpop.permute.xlu0 %63
    %v66 = vsub.f32 %v48, %v59
    %v67 = vsub.f32 %v49, %v59
    %v68 = vsub.f32 %v50, %v59
    %v69 = vsub.f32 %v51, %v59
    %v70 = vsub.f32 %v48, %v64
    %v71 = vsub.f32 %v49, %v64
    %v72 = vsub.f32 %v50, %v64
    %v73 = vsub.f32 %v51, %v64
    %s74 = scalar_lea.vmem %s1, 8
    %v75 = vld [vmem:[%s74] sm:$0xf]
    %s76 = scalar_lea.vmem %s0, 32
    %v77 = vld [vmem:[%s76] sm:$0xff]
    %v78 = vld [vmem:[%s76 + $0x8] sm:$0xff]
    %v80 = vperm.slane %v75, 0
    %v81 = vperm.slane %v75, 1
    %v82 = vperm.slane %v75, 2
    %v83 = vperm.slane %v75, 3
    %89 = vset.pattern.permute.xlu0 0
    %90 = vperm.xlu0 %89, %v77
    %v91 = vpop.permute.xlu0 %90
    %94 = vset.pattern.permute.xlu0 0
    %95 = vperm.xlu0 %94, %v78
    %v96 = vpop.permute.xlu0 %95
    %v98 = vsub.f32 %v80, %v91
    %v99 = vsub.f32 %v81, %v91
    %v100 = vsub.f32 %v82, %v91
    %v101 = vsub.f32 %v83, %v91
    %v102 = vsub.f32 %v80, %v96
    %v103 = vsub.f32 %v81, %v96
    %v104 = vsub.f32 %v82, %v96
    %v105 = vsub.f32 %v83, %v96
    %v106 = vmul.f32 %v34, %v34
    %v107 = vmul.f32 %v35, %v35
    %v108 = vmul.f32 %v36, %v36
    %v109 = vmul.f32 %v37, %v37
    %v110 = vmul.f32 %v38, %v38
    %v111 = vmul.f32 %v39, %v39
    %v112 = vmul.f32 %v40, %v40
    %v113 = vmul.f32 %v41, %v41
    %v114 = vmul.f32 %v66, %v66
    %v115 = vmul.f32 %v67, %v67
    %v116 = vmul.f32 %v68, %v68
    %v117 = vmul.f32 %v69, %v69
    %v118 = vmul.f32 %v70, %v70
    %v119 = vmul.f32 %v71, %v71
    %v120 = vmul.f32 %v72, %v72
    %v121 = vmul.f32 %v73, %v73
    %v122 = vadd.f32 %v106, %v114
    %v123 = vadd.f32 %v107, %v115
    %v124 = vadd.f32 %v108, %v116
    %v125 = vadd.f32 %v109, %v117
    %v126 = vadd.f32 %v110, %v118
    %v127 = vadd.f32 %v111, %v119
    %v128 = vadd.f32 %v112, %v120
    %v129 = vadd.f32 %v113, %v121
    %v130 = vmul.f32 %v98, %v98
    %v131 = vmul.f32 %v99, %v99
    %v132 = vmul.f32 %v100, %v100
    %v133 = vmul.f32 %v101, %v101
    %v134 = vmul.f32 %v102, %v102
    %v135 = vmul.f32 %v103, %v103
    %v136 = vmul.f32 %v104, %v104
    %v137 = vmul.f32 %v105, %v105
    %v138 = vadd.f32 %v122, %v130
    %v139 = vadd.f32 %v123, %v131
    %v140 = vadd.f32 %v124, %v132
    %v141 = vadd.f32 %v125, %v133
    %v142 = vadd.f32 %v126, %v134
    %v143 = vadd.f32 %v127, %v135
    %v144 = vadd.f32 %v128, %v136
    %v145 = vadd.f32 %v129, %v137
    %146 = vst [vmem:[#allocation2] sm:$0xff] %v138
    %147 = vst [vmem:[#allocation2 + $0x8] sm:$0xff] %v139
    %148 = vst [vmem:[#allocation2 + $0x10] sm:$0xff] %v140
    %149 = vst [vmem:[#allocation2 + $0x18] sm:$0xff] %v141
    %150 = vst [vmem:[#allocation2 + $0x20] sm:$0xff] %v142
    %151 = vst [vmem:[#allocation2 + $0x28] sm:$0xff] %v143
    %152 = vst [vmem:[#allocation2 + $0x30] sm:$0xff] %v144
    %153 = vst [vmem:[#allocation2 + $0x38] sm:$0xff] %v145
    // Predicated region
    $region10: #{_dist2_call.1} parent=1 // pred_check
      _
    $region11: #{_dist2_call.1} parent=1 // pred_check_branch
      %155 = sbr.rel (0) target = $region13
    $region12: #{_dist2_call.1} parent=1 // pred_region
      %157 = vsyncadd [#allocation3], 0
      %s158 = sshll.u32 [#allocation2], 4
      %s159 = int_to_ptr.vmem [resolvable:$true] %s158
      %s160 = sshll.u32 %s2, 4
      %s161 = int_to_ptr.hbm [resolvable:$true] %s160
      %166 = dma.vmem_to_hbm [thread:$0]  %s159, 1024, %s161, [#allocation3], 512, 512, 32
    $region13: #{_dist2_call.1} parent=1 // pred_fallthru
      _
    // Predicated region
    $region14: #{_dist2_call.1} parent=1 // pred_check
      _
    $region15: #{_dist2_call.1} parent=1 // pred_check_branch
      %168 = sbr.rel (0) target = $region17
    $region16: #{_dist2_call.1} parent=1 // pred_region
      %170 = dma.done [#allocation3], 1024
    $region17: #{_dist2_call.1} parent=1 // pred_fallthru
      _
    %171 = vsyncpa [#allocation3], 1

</llo_original>
